<compile_context>
chip_gen: v7x
topology: tpu7x:2x2x1
jax: 0.10.0
libtpu: 0.0.40
codegen_flags: <defaults>
</compile_context>

<pallas_src>
import functools

import jax
import jax.numpy as jnp
from jax import lax
from jax.experimental import pallas as pl
from jax.experimental.pallas import tpu as pltpu

EPS = 1e-5


def _round_up(x, m):
    return (x + m - 1) // m * m


def _cdiv(a, b):
    return -(-a // b)


def _vmem_limit_bytes():
    # Generation-aware scoped-VMEM budget: ~3/4 of physical VMEM, capped at
    # 96 MiB (-> ~96 MiB on v5e/v6e's 128 MiB, ~48 MiB on v7x's 64 MiB),
    # conservative 32 MiB fallback if the hardware query is unavailable.
    try:
        cap = int(pltpu.get_tpu_info().vmem_capacity_bytes)
    except Exception:
        return 32 * 1024 * 1024
    return max(32 * 1024 * 1024, min(cap * 3 // 4, 96 * 1024 * 1024))


def _choose_tile(n, block_m):
    """Largest tile <= block_m (multiple of 8) with bounded row-padding waste."""
    n8 = _round_up(n, 8)
    tm = max(8, min(block_m, n8) // 8 * 8)
    # Shrink while padding waste exceeds ~12.5% of the batch.
    while tm > 8 and (_round_up(n8, tm) - n8) * 8 > n8:
        tm = max(8, (tm // 2) // 8 * 8)
    return tm


# ---------------------------------------------------------------------------
# Phase 1: per-core partial BatchNorm statistics (no hs writeback to HBM).
#   stats_ref: (16, units) resident accumulator for this core's grid slice;
#   rows 0-7 hold per-sublane partial sums of h, rows 8-15 partial sums of
#   h*h.  Updates are plain VPU vreg adds; the 8->1 sublane reduce and the
#   mean / inv_std conversion happen once in the wrapper.
# ---------------------------------------------------------------------------
def _stats_kernel(feat_ref, w1_ref, stats_ref):
    i = pl.program_id(1)

    @pl.when(i == 0)
    def _():
        stats_ref[...] = jnp.zeros_like(stats_ref)

    feat = feat_ref[...].astype(jnp.float32)
    h = jnp.dot(feat, w1_ref[...], preferred_element_type=jnp.float32)
    tm, units = h.shape
    h3 = h.reshape(tm // 8, 8, units)        # layout-preserving: whole sublane tiles
    stats_ref[0:8, :] += jnp.sum(h3, axis=0)
    stats_ref[8:16, :] += jnp.sum(h3 * h3, axis=0)


# ---------------------------------------------------------------------------
# Phase 2: recompute [h | s], BN apply + ReLU + W2 matmul + shortcut/bias add
# + LayerNorm, per M tile.
#   p_ref rows: 0 = b2 + bs (fused bias), 1 = bn_gamma, 2 = bn_beta,
#               3 = ln_gamma, 4 = ln_beta, 5 = bn mean, 6 = bn inv_std.
# ---------------------------------------------------------------------------
def _apply_kernel(feat_ref, w_ref, w2_ref, p_ref, out_ref):
    units = w2_ref.shape[0]
    feat = feat_ref[...].astype(jnp.float32)
    # One fused MXU pass produces [h | s]; cheap at small K=F and avoids an
    # (N, 2U) f32 HBM round-trip between the two pallas_calls.
    hs = jnp.dot(feat, w_ref[...], preferred_element_type=jnp.float32)
    h = hs[:, :units]
    s = hs[:, units:]

    bias = p_ref[0:1, :]
    bn_g = p_ref[1:2, :]
    bn_b = p_ref[2:3, :]
    ln_g = p_ref[3:4, :]
    ln_b = p_ref[4:5, :]
    mean = p_ref[5:6, :]
    inv_std = p_ref[6:7, :]

    # BatchNorm (training-mode, full-batch stats from phase 1) + ReLU.
    h = (h - mean) * (inv_std * bn_g) + bn_b
    h = jnp.maximum(h, 0.0)

    # Second Linear, shortcut and fused bias (b2 + bs summed before LN anyway).
    f = jnp.dot(h, w2_ref[...], preferred_element_type=jnp.float32) + s + bias

    # LayerNorm over last dim.
    mu = jnp.mean(f, axis=-1, keepdims=True)
    d = f - mu
    v = jnp.mean(d * d, axis=-1, keepdims=True)
    out_ref[...] = (d * lax.rsqrt(v + EPS) * ln_g + ln_b).astype(out_ref.dtype)


# ---------------------------------------------------------------------------
# Small-batch fused path: whole forward (including BN stats) in one kernel.
# ---------------------------------------------------------------------------
def _fused_kernel(feat_ref, w_ref, w2_ref, p_ref, out_ref, *, n_rows):
    units = w2_ref.shape[0]
    feat = feat_ref[...].astype(jnp.float32)
    hs = jnp.dot(feat, w_ref[...], preferred_element_type=jnp.float32)
    h = hs[:, :units]
    s = hs[:, units:]

    # Zero-padded rows contribute 0 to the sums; divisor is the true N.
    inv_n = 1.0 / n_rows
    mean = jnp.sum(h, axis=0, keepdims=True) * inv_n
    var = jnp.sum(h * h, axis=0, keepdims=True) * inv_n - mean * mean
    inv_std = lax.rsqrt(jnp.maximum(var, 0.0) + EPS)

    bias = p_ref[0:1, :]
    bn_g = p_ref[1:2, :]
    bn_b = p_ref[2:3, :]
    ln_g = p_ref[3:4, :]
    ln_b = p_ref[4:5, :]

    h = (h - mean) * (inv_std * bn_g) + bn_b
    h = jnp.maximum(h, 0.0)
    f = jnp.dot(h, w2_ref[...], preferred_element_type=jnp.float32) + s + bias

    mu = jnp.mean(f, axis=-1, keepdims=True)
    d = f - mu
    v = jnp.mean(d * d, axis=-1, keepdims=True)
    out_ref[...] = (d * lax.rsqrt(v + EPS) * ln_g + ln_b).astype(out_ref.dtype)


def mi_linear_block(feat, params, bln=True, block_m=512):
    """feat: (N, feature_sz) float32. params: dict of weights (see init_params)."""
    # TODO(synk): bln=False branch (skip LayerNorm) and BatchNorm eval-mode
    # running statistics are not implemented; this matches the module's
    # default bln=True training-mode forward.
    assert bln, "kernel implements the default bln=True path"
    N, F = feat.shape
    U = params["w2"].shape[0]

    # --- wrapper-side glue (one-off O(params) work) ---------------------------
    w1_t = params["w1"].T                                               # (F, U)
    w_feat = jnp.concatenate([w1_t, params["ws"].T], axis=1)            # (F, 2U)
    w2_t = params["w2"].T                                               # (U, U)
    # Pack all per-unit vectors into one (8, U) tile; fuse b2 + bs.
    pvec = jnp.zeros((8, U), jnp.float32)
    pvec = pvec.at[0].set(params["b2"] + params["bs"])
    pvec = pvec.at[1].set(params["bn_gamma"])
    pvec = pvec.at[2].set(params["bn_beta"])
    pvec = pvec.at[3].set(params["ln_gamma"])
    pvec = pvec.at[4].set(params["ln_beta"])

    vmem_limit = _vmem_limit_bytes()
    n8 = _round_up(N, 8)

    # --- small-batch fast path: one kernel, one dispatch -----------------------
    if n8 <= max(block_m, 8):
        feat_p = jnp.pad(feat, ((0, n8 - N), (0, 0))) if n8 != N else feat
        out = pl.pallas_call(
            functools.partial(_fused_kernel, n_rows=float(N)),
            out_shape=jax.ShapeDtypeStruct((n8, U), feat.dtype),
            grid=(1,),
            in_specs=[
                pl.BlockSpec((n8, F), lambda i: (0, 0)),       # feat (whole batch)
                pl.BlockSpec((F, 2 * U), lambda i: (0, 0)),    # [W1^T | Ws^T]
                pl.BlockSpec((U, U), lambda i: (0, 0)),        # W2^T
                pl.BlockSpec((8, U), lambda i: (0, 0)),        # packed bias/affine
            ],
            out_specs=pl.BlockSpec((n8, U), lambda i: (0, 0)),
            compiler_params=pltpu.CompilerParams(
                dimension_semantics=("arbitrary",),
                vmem_limit_bytes=vmem_limit),
        )(feat_p, w_feat, w2_t, pvec)
        return out[:N] if n8 != N else out

    # --- M tiling ---------------------------------------------------------------
    tm = _choose_tile(N, block_m)
    n_tiles = _cdiv(N, tm)            # tiles carrying real rows (phase-2 grid)
    half = _cdiv(n_tiles, 2)          # phase-1 tiles per TensorCore
    n_pad = 2 * half * tm             # rows needed for the even 2-core split
    feat_p = jnp.pad(feat, ((0, n_pad - N), (0, 0))) if n_pad != N else feat
    # Zero-padded rows contribute 0 to the BN sums; the divisor uses the true N.

    # Phase 1: BN statistics only.  Leading size-2 "parallel" axis shards the
    # pass across the two TensorCores on v7x (no-op on v5e/v6e); each core
    # accumulates its own (16, U) partial in a resident VMEM output block,
    # revisited across the trailing "arbitrary" tile axis.
    partials = pl.pallas_call(
        _stats_kernel,
        out_shape=jax.ShapeDtypeStruct((2, 16, U), jnp.float32),
        grid=(2, half),
        in_specs=[
            pl.BlockSpec((tm, F), lambda c, i: (c * half + i, 0)),   # feat tile
            pl.BlockSpec((F, U), lambda c, i: (0, 0)),               # W1^T
        ],
        out_specs=pl.BlockSpec((None, 16, U), lambda c, i: (c, 0, 0)),
        compiler_params=pltpu.CompilerParams(
            dimension_semantics=("parallel", "arbitrary"),
            vmem_limit_bytes=vmem_limit),
    )(feat_p, w1_t)

    # O(U) combine in the wrapper: merge the two core partials, 8->1 sublane
    # reduce, biased batch variance, fold mean / inv_std into the packed
    # per-unit parameter tile (rows 5 / 6) so phase 2 has one fewer input.
    # (E[h^2]-E[h]^2 can cancel for |mean| >> std; clamped at 0 for safety.)
    acc = partials.sum(axis=0)
    mean = acc[:8].sum(axis=0) / N
    var = acc[8:].sum(axis=0) / N - mean * mean
    inv_std = lax.rsqrt(jnp.maximum(var, 0.0) + EPS)
    pvec = pvec.at[5].set(mean).at[6].set(inv_std)

    # Phase 2: recompute [h | s], BN/ReLU, W2 matmul, shortcut + fused bias,
    # LayerNorm.  Purely per-tile -> "parallel" (megacore shards on v7x).
    # NOTE: if profiling shows exposed DMA here, pipeline_mode=pl.Buffered(3)
    # on the feat stream (and Buffered(1) on the constant weight blocks for
    # very large units) is the next lever.
    n_out = n_tiles * tm
    out = pl.pallas_call(
        _apply_kernel,
        out_shape=jax.ShapeDtypeStruct((n_out, U), feat.dtype),
        grid=(n_tiles,),
        in_specs=[
            pl.BlockSpec((tm, F), lambda i: (i, 0)),        # feat tile
            pl.BlockSpec((F, 2 * U), lambda i: (0, 0)),     # [W1^T | Ws^T]
            pl.BlockSpec((U, U), lambda i: (0, 0)),         # W2^T
            pl.BlockSpec((8, U), lambda i: (0, 0)),         # packed bias/affine/stats
        ],
        out_specs=pl.BlockSpec((tm, U), lambda i: (i, 0)),
        compiler_params=pltpu.CompilerParams(
            dimension_semantics=("parallel",),
            vmem_limit_bytes=vmem_limit),
    )(feat_p, w_feat, w2_t, pvec)

    return out[:N] if n_out != N else out


def init_params(key, feature_sz, units):
    """Deterministic synthetic init mirroring the module's __init__ shapes."""
    k1, k2, k3, k4, k5 = jax.random.split(key, 5)

    # nn.Linear default init: U(-1/sqrt(fan_in), 1/sqrt(fan_in))
    lim1 = 1.0 / (feature_sz ** 0.5)
    lim2 = 1.0 / (units ** 0.5)
    w1 = jax.random.uniform(k1, (units, feature_sz), jnp.float32, -lim1, lim1)
    w2 = jax.random.uniform(k2, (units, units), jnp.float32, -lim2, lim2)
    b2 = jax.random.uniform(k3, (units,), jnp.float32, -lim2, lim2)

    # shortcut: uniform(-0.01, 0.01) then identity mask -> 1.0 on the diagonal
    ws = jax.random.uniform(k4, (units, feature_sz), jnp.float32, -0.01, 0.01)
    diag = jnp.arange(feature_sz)
    ws = ws.at[diag, diag].set(1.0)
    bs = jax.random.uniform(k5, (units,), jnp.float32, -lim1, lim1)

    return dict(
        w1=w1, w2=w2, b2=b2, ws=ws, bs=bs,
        bn_gamma=jnp.ones((units,), jnp.float32),
        bn_beta=jnp.zeros((units,), jnp.float32),
        ln_gamma=jnp.ones((units,), jnp.float32),
        ln_beta=jnp.zeros((units,), jnp.float32),
    )


def reference(feat, p):
    """Pure-JAX reference of the PyTorch forward (training-mode BatchNorm)."""
    h = feat @ p["w1"].T
    mean = h.mean(0, keepdims=True)
    var = ((h - mean) ** 2).mean(0, keepdims=True)
    h = (h - mean) / jnp.sqrt(var + EPS) * p["bn_gamma"] + p["bn_beta"]
    h = jnp.maximum(h, 0.0)
    h = h @ p["w2"].T + p["b2"]
    s = feat @ p["ws"].T + p["bs"]
    f = h + s
    mu = f.mean(-1, keepdims=True)
    v = ((f - mu) ** 2).mean(-1, keepdims=True)
    return (f - mu) / jnp.sqrt(v + EPS) * p["ln_gamma"] + p["ln_beta"]


if __name__ == "__main__":
    key = jax.random.PRNGKey(0)
    kx1, kx2, kp = jax.random.split(key, 3)

    FEATURE_SZ, UNITS = 32, 128
    params = init_params(kp, FEATURE_SZ, UNITS)

    # Test 1: tiny batch -> fused single-dispatch path.
    feat1 = jax.random.normal(kx1, (8, FEATURE_SZ), jnp.float32)
    out1 = jax.block_until_ready(mi_linear_block(feat1, params))
    ref1 = reference(feat1, params)
    assert out1.shape == (8, UNITS)
    assert jnp.allclose(out1, ref1, atol=1e-4, rtol=1e-4), \
        float(jnp.max(jnp.abs(out1 - ref1)))

    # Test 2: multi-tile two-phase path (exercises per-core partial BN stats,
    # cross-tile accumulation and row padding).
    feat2 = jax.random.normal(kx2, (40, FEATURE_SZ), jnp.float32)
    out2 = jax.block_until_ready(mi_linear_block(feat2, params, block_m=16))
    ref2 = reference(feat2, params)
    assert out2.shape == (40, UNITS)
    assert jnp.allclose(out2, ref2, atol=1e-4, rtol=1e-4), \
        float(jnp.max(jnp.abs(out2 - ref2)))

    print("KERNEL_OK")
</pallas_src>

<mosaic_0001>
module attributes {stable_mosaic.version = 11 : i64} {
  func.func @_fused_kernel(%arg0: i32, %arg1: memref<8x32xf32, #tpu.memory_space<vmem>>, %arg2: memref<32x256xf32, #tpu.memory_space<vmem>>, %arg3: memref<128x128xf32, #tpu.memory_space<vmem>>, %arg4: memref<8x128xf32, #tpu.memory_space<vmem>>, %arg5: memref<8x128xf32, #tpu.memory_space<vmem>>) attributes {dimension_semantics = [#tpu.dimension_semantics<arbitrary>], iteration_bounds = array<i64: 1>, scalar_prefetch = 0 : i64, scratch_operands = 0 : i64, tpu.core_type = #tpu.core_type<tc>, window_params = [{pipeline_mode = #tpu.pipeline_mode<synchronous>, transform_indices = @transform_0, window_bounds = array<i64: 8, 32>}, {pipeline_mode = #tpu.pipeline_mode<synchronous>, transform_indices = @transform_1, window_bounds = array<i64: 32, 256>}, {pipeline_mode = #tpu.pipeline_mode<synchronous>, transform_indices = @transform_2, window_bounds = array<i64: 128, 128>}, {pipeline_mode = #tpu.pipeline_mode<synchronous>, transform_indices = @transform_3, window_bounds = array<i64: 8, 128>}, {pipeline_mode = #tpu.pipeline_mode<synchronous>, transform_indices = @transform_4, window_bounds = array<i64: 8, 128>}]} {
    %c0 = arith.constant 0 : index
    %c0_0 = arith.constant 0 : index
    %0 = vector.load %arg1[%c0, %c0_0] : memref<8x32xf32, #tpu.memory_space<vmem>>, vector<8x32xf32>
    %c0_1 = arith.constant 0 : index
    %c0_2 = arith.constant 0 : index
    %1 = vector.load %arg2[%c0_1, %c0_2] : memref<32x256xf32, #tpu.memory_space<vmem>>, vector<32x256xf32>
    %cst = arith.constant dense<0.000000e+00> : vector<8x256xf32>
    %2 = tpu.matmul %0, %1, %cst {dimension_numbers = #tpu.dot_dimension_numbers<[1], [0], [0], [1], [0, 0, 1, 1], [], []>} : vector<8x32xf32>, vector<32x256xf32>, vector<8x256xf32> -> vector<8x256xf32>
    %3 = vector.extract_strided_slice %2 {offsets = [0, 0], sizes = [8, 128], strides = [1, 1]} : vector<8x256xf32> to vector<8x128xf32>
    %4 = vector.extract_strided_slice %2 {offsets = [0, 128], sizes = [8, 128], strides = [1, 1]} : vector<8x256xf32> to vector<8x128xf32>
    %cst_3 = arith.constant dense<0.000000e+00> : vector<128xf32>
    %5 = vector.multi_reduction <add>, %3, %cst_3 [0] : vector<8x128xf32> to vector<128xf32>
    %6 = vector.shape_cast %5 : vector<128xf32> to vector<1x128xf32>
    %cst_4 = arith.constant 1.250000e-01 : f32
    %7 = vector.broadcast %cst_4 : f32 to vector<1x128xf32>
    %8 = arith.mulf %6, %7 : vector<1x128xf32>
    %9 = arith.mulf %3, %3 : vector<8x128xf32>
    %cst_5 = arith.constant dense<0.000000e+00> : vector<128xf32>
    %10 = vector.multi_reduction <add>, %9, %cst_5 [0] : vector<8x128xf32> to vector<128xf32>
    %11 = vector.shape_cast %10 : vector<128xf32> to vector<1x128xf32>
    %cst_6 = arith.constant 1.250000e-01 : f32
    %12 = vector.broadcast %cst_6 : f32 to vector<1x128xf32>
    %13 = arith.mulf %11, %12 : vector<1x128xf32>
    %14 = arith.mulf %8, %8 : vector<1x128xf32>
    %15 = arith.subf %13, %14 : vector<1x128xf32>
    %cst_7 = arith.constant 0.000000e+00 : f32
    %16 = vector.broadcast %cst_7 : f32 to vector<1x128xf32>
    %17 = arith.maximumf %15, %16 : vector<1x128xf32>
    %cst_8 = arith.constant 9.99999974E-6 : f32
    %18 = vector.broadcast %cst_8 : f32 to vector<1x128xf32>
    %19 = arith.addf %17, %18 : vector<1x128xf32>
    %20 = math.rsqrt %19 : vector<1x128xf32>
    %c0_9 = arith.constant 0 : index
    %c0_10 = arith.constant 0 : index
    %21 = vector.load %arg4[%c0_9, %c0_10] : memref<8x128xf32, #tpu.memory_space<vmem>>, vector<1x128xf32>
    %c1 = arith.constant 1 : index
    %c0_11 = arith.constant 0 : index
    %22 = vector.load %arg4[%c1, %c0_11] : memref<8x128xf32, #tpu.memory_space<vmem>>, vector<1x128xf32>
    %c2 = arith.constant 2 : index
    %c0_12 = arith.constant 0 : index
    %23 = vector.load %arg4[%c2, %c0_12] : memref<8x128xf32, #tpu.memory_space<vmem>>, vector<1x128xf32>
    %c3 = arith.constant 3 : index
    %c0_13 = arith.constant 0 : index
    %24 = vector.load %arg4[%c3, %c0_13] : memref<8x128xf32, #tpu.memory_space<vmem>>, vector<1x128xf32>
    %c4 = arith.constant 4 : index
    %c0_14 = arith.constant 0 : index
    %25 = vector.load %arg4[%c4, %c0_14] : memref<8x128xf32, #tpu.memory_space<vmem>>, vector<1x128xf32>
    %26 = vector.broadcast %8 : vector<1x128xf32> to vector<8x128xf32>
    %27 = arith.subf %3, %26 : vector<8x128xf32>
    %28 = arith.mulf %20, %22 : vector<1x128xf32>
    %29 = vector.broadcast %28 : vector<1x128xf32> to vector<8x128xf32>
    %30 = arith.mulf %27, %29 : vector<8x128xf32>
    %31 = vector.broadcast %23 : vector<1x128xf32> to vector<8x128xf32>
    %32 = arith.addf %30, %31 : vector<8x128xf32>
    %cst_15 = arith.constant 0.000000e+00 : f32
    %33 = vector.broadcast %cst_15 : f32 to vector<8x128xf32>
    %34 = arith.maximumf %32, %33 : vector<8x128xf32>
    %c0_16 = arith.constant 0 : index
    %c0_17 = arith.constant 0 : index
    %35 = vector.load %arg3[%c0_16, %c0_17] : memref<128x128xf32, #tpu.memory_space<vmem>>, vector<128x128xf32>
    %cst_18 = arith.constant dense<0.000000e+00> : vector<8x128xf32>
    %36 = tpu.matmul %34, %35, %cst_18 {dimension_numbers = #tpu.dot_dimension_numbers<[1], [0], [0], [1], [0, 0, 1, 1], [], []>} : vector<8x128xf32>, vector<128x128xf32>, vector<8x128xf32> -> vector<8x128xf32>
    %37 = arith.addf %36, %4 : vector<8x128xf32>
    %38 = vector.broadcast %21 : vector<1x128xf32> to vector<8x128xf32>
    %39 = arith.addf %37, %38 : vector<8x128xf32>
    %cst_19 = arith.constant dense<0.000000e+00> : vector<8xf32>
    %40 = vector.multi_reduction <add>, %39, %cst_19 [1] : vector<8x128xf32> to vector<8xf32>
    %41 = vector.shape_cast %40 : vector<8xf32> to vector<8x1xf32>
    %cst_20 = arith.constant 1.280000e+02 : f32
    %42 = vector.broadcast %cst_20 : f32 to vector<8x1xf32>
    %43 = arith.divf %41, %42 : vector<8x1xf32>
    %44 = vector.broadcast %43 : vector<8x1xf32> to vector<8x128xf32>
    %45 = arith.subf %39, %44 : vector<8x128xf32>
    %46 = arith.mulf %45, %45 : vector<8x128xf32>
    %cst_21 = arith.constant dense<0.000000e+00> : vector<8xf32>
    %47 = vector.multi_reduction <add>, %46, %cst_21 [1] : vector<8x128xf32> to vector<8xf32>
    %48 = vector.shape_cast %47 : vector<8xf32> to vector<8x1xf32>
    %cst_22 = arith.constant 1.280000e+02 : f32
    %49 = vector.broadcast %cst_22 : f32 to vector<8x1xf32>
    %50 = arith.divf %48, %49 : vector<8x1xf32>
    %cst_23 = arith.constant 9.99999974E-6 : f32
    %51 = vector.broadcast %cst_23 : f32 to vector<8x1xf32>
    %52 = arith.addf %50, %51 : vector<8x1xf32>
    %53 = math.rsqrt %52 : vector<8x1xf32>
    %54 = vector.broadcast %53 : vector<8x1xf32> to vector<8x128xf32>
    %55 = arith.mulf %45, %54 : vector<8x128xf32>
    %56 = vector.broadcast %24 : vector<1x128xf32> to vector<8x128xf32>
    %57 = arith.mulf %55, %56 : vector<8x128xf32>
    %58 = vector.broadcast %25 : vector<1x128xf32> to vector<8x128xf32>
    %59 = arith.addf %57, %58 : vector<8x128xf32>
    %c0_24 = arith.constant 0 : index
    %c0_25 = arith.constant 0 : index
    %60 = vector.load %arg5[%c0_24, %c0_25] : memref<8x128xf32, #tpu.memory_space<vmem>>, vector<8x128xf32>
    tpu.vector_store %arg5[%c0_24, %c0_25], %59 {strides = array<i32>} : memref<8x128xf32, #tpu.memory_space<vmem>>, vector<8x128xf32>,
    return
  }
  func.func @transform_0(%arg0: i32) -> (i32, i32) {
    %c0_i32 = arith.constant 0 : i32
    %c0_i32_0 = arith.constant 0 : i32
    %c0_i32_1 = arith.constant 0 : i32
    return %c0_i32, %c0_i32_0 : i32, i32
  }
  func.func @transform_1(%arg0: i32) -> (i32, i32) {
    %c0_i32 = arith.constant 0 : i32
    %c0_i32_0 = arith.constant 0 : i32
    %c0_i32_1 = arith.constant 0 : i32
    return %c0_i32, %c0_i32_0 : i32, i32
  }
  func.func @transform_2(%arg0: i32) -> (i32, i32) {
    %c0_i32 = arith.constant 0 : i32
    %c0_i32_0 = arith.constant 0 : i32
    %c0_i32_1 = arith.constant 0 : i32
    return %c0_i32, %c0_i32_0 : i32, i32
  }
  func.func @transform_3(%arg0: i32) -> (i32, i32) {
    %c0_i32 = arith.constant 0 : i32
    %c0_i32_0 = arith.constant 0 : i32
    %c0_i32_1 = arith.constant 0 : i32
    return %c0_i32, %c0_i32_0 : i32, i32
  }
  func.func @transform_4(%arg0: i32) -> (i32, i32) {
    %c0_i32 = arith.constant 0 : i32
    %c0_i32_0 = arith.constant 0 : i32
    %c0_i32_1 = arith.constant 0 : i32
    return %c0_i32, %c0_i32_0 : i32, i32
  }
}

</mosaic_0001>

<llo_original>
// kernel: tpu_custom_call.1
$region0: #{tpu_custom_call.1}
  #allocation0 [shape = 'u32[]', space=smem, size = 0x4, offset = 0x4, fixed_abs, tag = 'smem constant byte address 0x4 - core index']
  #allocation1 [shape = 'u32[144,128]{1,0:T(1,128)}', space=vmem, size = 0x12000, scoped, tag = 'internal scratch']
  %s0 = inlined_call_operand.hbm [shape: f32[8,32], index: 0, kind: input, shape index: {}]
  %s1 = inlined_call_operand.hbm [shape: f32[32,256], index: 1, kind: input, shape index: {}]
  %s2 = inlined_call_operand.hbm [shape: f32[128,128], index: 2, kind: input, shape index: {}]
  %s3 = inlined_call_operand.vmem [shape: f32[8,128], index: 3, kind: input, shape index: {}]
  %s4 = inlined_call_operand.hbm [shape: f32[8,128], index: 4, kind: output, shape index: {}]
  %s5 = sld [smem:[#allocation0]]
  $region38: #{tpu_custom_call.1} parent=0
    _
  %s7 = ssub.s32 1, %s5
  %s8 = scalar_select 0, %s7, %s5
  $region1: #{tpu_custom_call.1} parent=0
    #allocation2 [shape = 'u8[4096]{0}', space=vmem, size = 0x1000, scoped, tag = 'input window, operand 0, single buffered']
    #allocation3 [shape = 's32[1]{0}', space=sflag, size = 0x4, scoped, tag = 'scoped memory for tpu_custom_call.1']
    #allocation4 [shape = 's32[1]{0}', space=sflag, size = 0x4, scoped, tag = 'scoped memory for tpu_custom_call.1']
    #allocation5 [shape = 'u8[32768]{0}', space=vmem, size = 0x8000, scoped, tag = 'input window, operand 1, single buffered']
    #allocation6 [shape = 's32[1]{0}', space=sflag, size = 0x4, scoped, tag = 'scoped memory for tpu_custom_call.1']
    #allocation7 [shape = 'u8[65536]{0}', space=vmem, size = 0x10000, scoped, tag = 'input window, operand 2, single buffered']
    #allocation8 [shape = 'u8[4096]{0}', space=vmem, size = 0x1000, scoped, tag = 'output window, operand 0, single buffered']
    %9 = vsyncpa [#allocation3], 0
    %10 = vsyncpa [#allocation6], 0
    %11 = vsyncpa [#allocation4], 0
    // Predicated region
    $region2: #{tpu_custom_call.1} parent=1 // pred_check
      _
    $region3: #{tpu_custom_call.1} parent=1 // pred_check_branch
      %13 = sbr.rel (0) target = $region5
    $region4: #{tpu_custom_call.1} parent=1 // pred_region
      %s15 = ssub.s32 128, 128
      %16 = vsyncadd [#allocation3], %s15
      %s18 = sshll.u32 [#allocation2], 4
      %s19 = int_to_ptr.vmem [resolvable:$true] %s18
      %21 = dma.hbm_to_vmem [thread:$0]  %s0, 128, %s19, [#allocation3]
    $region5: #{tpu_custom_call.1} parent=1 // pred_fallthru
      _
    // Predicated region
    $region6: #{tpu_custom_call.1} parent=1 // pred_check
      _
    $region7: #{tpu_custom_call.1} parent=1 // pred_check_branch
      %23 = sbr.rel (0) target = $region9
    $region8: #{tpu_custom_call.1} parent=1 // pred_region
      %s25 = ssub.s32 1024, 1024
      %26 = vsyncadd [#allocation6], %s25
      %s27 = sshll.u32 [#allocation5], 4
      %s28 = int_to_ptr.vmem [resolvable:$true] %s27
      %33 = dma.hbm_to_vmem [thread:$0]  %s1, 1024, %s28, [#allocation6], 256, 256, 16
    $region9: #{tpu_custom_call.1} parent=1 // pred_fallthru
      _
    // Predicated region
    $region10: #{tpu_custom_call.1} parent=1 // pred_check
      _
    $region11: #{tpu_custom_call.1} parent=1 // pred_check_branch
      %35 = sbr.rel (0) target = $region13
    $region12: #{tpu_custom_call.1} parent=1 // pred_region
      %s37 = ssub.s32 2048, 2048
      %38 = vsyncadd [#allocation6], %s37
      %s39 = sshll.u32 [#allocation7], 4
      %s40 = int_to_ptr.vmem [resolvable:$true] %s39
      %45 = dma.hbm_to_vmem [thread:$0]  %s2, 2048, %s40, [#allocation6], 128, 128, 8
    $region13: #{tpu_custom_call.1} parent=1 // pred_fallthru
      _
    // Predicated region
    $region14: #{tpu_custom_call.1} parent=1 // pred_check
      _
    $region15: #{tpu_custom_call.1} parent=1 // pred_check_branch
      %47 = sbr.rel (0) target = $region17
    $region16: #{tpu_custom_call.1} parent=1 // pred_region
      _
    $region17: #{tpu_custom_call.1} parent=1 // pred_fallthru
      _
    // Predicated region
    $region18: #{tpu_custom_call.1} parent=1 // pred_check
      _
    $region19: #{tpu_custom_call.1} parent=1 // pred_check_branch
      %49 = sbr.rel (0) target = $region21
    $region20: #{tpu_custom_call.1} parent=1 // pred_region
      %50 = dma.done [#allocation3], 128
    $region21: #{tpu_custom_call.1} parent=1 // pred_fallthru
      _
    // Predicated region
    $region22: #{tpu_custom_call.1} parent=1 // pred_check
      _
    $region23: #{tpu_custom_call.1} parent=1 // pred_check_branch
      %52 = sbr.rel (0) target = $region25
    $region24: #{tpu_custom_call.1} parent=1 // pred_region
      %53 = dma.done [#allocation6], 1024
    $region25: #{tpu_custom_call.1} parent=1 // pred_fallthru
      _
    // Predicated region
    $region26: #{tpu_custom_call.1} parent=1 // pred_check
      _
    $region27: #{tpu_custom_call.1} parent=1 // pred_check_branch
      %55 = sbr.rel (0) target = $region29
    $region28: #{tpu_custom_call.1} parent=1 // pred_region
      %56 = dma.done [#allocation6], 2048
    $region29: #{tpu_custom_call.1} parent=1 // pred_fallthru
      _
    %v57 = vld [vmem:[#allocation2] sm:$0xff]
    %v58 = vld [vmem:[#allocation5] sm:$0xff]
    %v59 = vld [vmem:[#allocation5 + $0x8] sm:$0xff]
    %v60 = vld [vmem:[#allocation5 + $0x10] sm:$0xff]
    %v61 = vld [vmem:[#allocation5 + $0x18] sm:$0xff]
    %v62 = vld [vmem:[#allocation5 + $0x20] sm:$0xff]
    %v63 = vld [vmem:[#allocation5 + $0x28] sm:$0xff]
    %v64 = vld [vmem:[#allocation5 + $0x30] sm:$0xff]
    %v65 = vld [vmem:[#allocation5 + $0x38] sm:$0xff]
    %vm66 = vcmask 261120
    %v68 = vsel %vm66, %v57, 0
    %70 = vmatprep.subr.mxu0 %v59
    %71 = vmatpush1.msra.mxu0 %v58
    %72 = vmatprep.subr.mxu0 %v61
    %73 = vmatpush1.msra.mxu0 %v60
    %74 = vmatprep.subr.mxu0 %v63
    %75 = vmatpush1.msra.mxu0 %v62
    %76 = vmatprep.subr.mxu0 %v65
    %77 = vmatpush1.msra.mxu0 %v64
    %78 = vmatprep.subr.mxu0 0.0
    %79 = vmatpush1.msra.mxu0 0.0
    %80 = vmatprep.subr.mxu0 0.0
    %81 = vmatpush1.msra.mxu0 0.0
    %82 = vmatprep.subr.mxu0 0.0
    %83 = vmatpush1.msra.mxu0 0.0
    %84 = vmatprep.subr.mxu0 0.0
    %85 = vmatpush1.msra.mxu0 0.0
    %86 = vmatprep.subr.mxu0 0.0
    %87 = vmatpush1.msra.mxu0 0.0
    %88 = vmatprep.subr.mxu0 0.0
    %89 = vmatpush1.msra.mxu0 0.0
    %90 = vmatprep.subr.mxu0 0.0
    %91 = vmatpush1.msra.mxu0 0.0
    %92 = vmatprep.subr.mxu0 0.0
    %93 = vmatpush1.msra.mxu0 0.0
    %94 = vmatprep.subr.mxu0 0.0
    %95 = vmatpush1.msra.mxu0 0.0
    %96 = vmatprep.subr.mxu0 0.0
    %97 = vmatpush1.msra.mxu0 0.0
    %98 = vmatprep.subr.mxu0 0.0
    %99 = vmatpush1.msra.mxu0 0.0
    %100 = vmatprep.subr.mxu0 0.0
    %101 = vmatpush1.msra.mxu0 0.0
    %102 = vmatprep.subr.mxu0 0.0
    %103 = vmatpush1.msra.mxu0 0.0
    %104 = vmatprep.subr.mxu0 0.0
    %105 = vmatpush1.msra.mxu0 0.0
    %106 = vmatprep.subr.mxu0 0.0
    %107 = vmatpush1.msra.mxu0 0.0
    %108 = vmatprep.subr.mxu0 0.0
    %109 = vmatpush1.msra.mxu0 0.0
    %110 = vmatprep.subr.mxu0 0.0
    %111 = vmatpush1.msra.mxu0 0.0
    %112 = vmatprep.subr.mxu0 0.0
    %113 = vmatpush1.msra.mxu0 0.0
    %114 = vmatprep.subr.mxu0 0.0
    %115 = vmatpush1.msra.mxu0 0.0
    %116 = vmatprep.subr.mxu0 0.0
    %117 = vmatpush1.msra.mxu0 0.0
    %118 = vmatprep.subr.mxu0 0.0
    %119 = vmatpush1.msra.mxu0 0.0
    %120 = vmatprep.subr.mxu0 0.0
    %121 = vmatpush1.msra.mxu0 0.0
    %122 = vmatprep.subr.mxu0 0.0
    %123 = vmatpush1.msra.mxu0 0.0
    %124 = vmatprep.subr.mxu0 0.0
    %125 = vmatpush1.msra.mxu0 0.0
    %126 = vmatprep.subr.mxu0 0.0
    %127 = vmatpush1.msra.mxu0 0.0
    %128 = vmatprep.subr.mxu0 0.0
    %129 = vmatpush1.msra.mxu0 0.0
    %130 = vmatprep.subr.mxu0 0.0
    %131 = vmatpush1.msra.mxu0 0.0
    %132 = vmatprep.subr.mxu0 0.0
    %133 = vmatpush1.msra.mxu0 0.0
    %134 = vmatprep.mubr.f32.mxu0 0.0
    %135 = vmatmul.mubr.f32.gmra.mrb[0].mxu0 %v68
    %v136 = vpop.f32.mrb[0].mxu0
    %v137 = vadd.f32 0.0, %v136
    %v138 = vpop.f32.mrb[0].mxu0
    %v139 = vadd.f32 0.0, %v138
    %140 = vdwg.mxu0
    %v141 = vrot.slane %v137, 4
    %v142 = vadd.f32 %v137, %v141
    %v143 = vrot.slane %v142, 2
    %v144 = vadd.f32 %v142, %v143
    %v145 = vrot.slane %v144, 1
    %v146 = vadd.f32 %v144, %v145
    %v147 = vmul.f32 %v146, 0.125
    %v148 = vmul.f32 %v137, %v137
    %v149 = vrot.slane %v148, 4
    %v150 = vadd.f32 %v148, %v149
    %v151 = vrot.slane %v150, 2
    %v152 = vadd.f32 %v150, %v151
    %v153 = vrot.slane %v152, 1
    %v154 = vadd.f32 %v152, %v153
    %v155 = vmul.f32 %v154, 0.125
    %v156 = vmul.f32 %v147, %v147
    %v157 = vsub.f32 %v155, %v156
    %v158 = vmax.f32 %v157, 0.0
    %v159 = vadd.f32 %v158, 1e-05
    %v160 = vrsqrt.pop %v159
    %v161 = vld [vmem:[%s3] sm:$0x1]
    %v162 = vld [vmem:[%s3 + $0x1] sm:$0x1]
    %v163 = vld [vmem:[%s3 + $0x2] sm:$0x1]
    %v164 = vld [vmem:[%s3 + $0x3] sm:$0x1]
    %v165 = vld [vmem:[%s3 + $0x4] sm:$0x1]
    %v166 = vsub.f32 %v137, %v147
    %v167 = vmul.f32 %v160, %v162
    %v168 = vlaneseq
    %v169 = vshrl.u32 %v168, 7
    %v170 = vsub.s32 0, %v169
    %v171 = vrot.slane %v167, %v170
    %v172 = vmul.f32 %v166, %v171
    %v173 = vlaneseq
    %v174 = vshrl.u32 %v173, 7
    %v175 = vsub.s32 0, %v174
    %v176 = vrot.slane %v163, %v175
    %v177 = vadd.f32 %v172, %v176
    %v178 = vmax.f32 %v177, 0.0
    %v179 = vld [vmem:[#allocation7] sm:$0xff]
    %v180 = vld [vmem:[#allocation7 + $0x8] sm:$0xff]
    %v181 = vld [vmem:[#allocation7 + $0x10] sm:$0xff]
    %v182 = vld [vmem:[#allocation7 + $0x18] sm:$0xff]
    %v183 = vld [vmem:[#allocation7 + $0x20] sm:$0xff]
    %v184 = vld [vmem:[#allocation7 + $0x28] sm:$0xff]
    %v185 = vld [vmem:[#allocation7 + $0x30] sm:$0xff]
    %v186 = vld [vmem:[#allocation7 + $0x38] sm:$0xff]
    %v187 = vld [vmem:[#allocation7 + $0x40] sm:$0xff]
    %v188 = vld [vmem:[#allocation7 + $0x48] sm:$0xff]
    %v189 = vld [vmem:[#allocation7 + $0x50] sm:$0xff]
    %v190 = vld [vmem:[#allocation7 + $0x58] sm:$0xff]
    %v191 = vld [vmem:[#allocation7 + $0x60] sm:$0xff]
    %v192 = vld [vmem:[#allocation7 + $0x68] sm:$0xff]
    %v193 = vld [vmem:[#allocation7 + $0x70] sm:$0xff]
    %v194 = vld [vmem:[#allocation7 + $0x78] sm:$0xff]
    %195 = vmatprep.subr.mxu0 0.0
    %196 = vmatpush1.msra.mxu0 %v179
    %197 = vmatprep.subr.mxu0 0.0
    %198 = vmatpush1.msra.mxu0 %v180
    %199 = vmatprep.subr.mxu0 0.0
    %200 = vmatpush1.msra.mxu0 %v181
    %201 = vmatprep.subr.mxu0 0.0
    %202 = vmatpush1.msra.mxu0 %v182
    %203 = vmatprep.subr.mxu0 0.0
    %204 = vmatpush1.msra.mxu0 %v183
    %205 = vmatprep.subr.mxu0 0.0
    %206 = vmatpush1.msra.mxu0 %v184
    %207 = vmatprep.subr.mxu0 0.0
    %208 = vmatpush1.msra.mxu0 %v185
    %209 = vmatprep.subr.mxu0 0.0
    %210 = vmatpush1.msra.mxu0 %v186
    %211 = vmatprep.subr.mxu0 0.0
    %212 = vmatpush1.msra.mxu0 %v187
    %213 = vmatprep.subr.mxu0 0.0
    %214 = vmatpush1.msra.mxu0 %v188
    %215 = vmatprep.subr.mxu0 0.0
    %216 = vmatpush1.msra.mxu0 %v189
    %217 = vmatprep.subr.mxu0 0.0
    %218 = vmatpush1.msra.mxu0 %v190
    %219 = vmatprep.subr.mxu0 0.0
    %220 = vmatpush1.msra.mxu0 %v191
    %221 = vmatprep.subr.mxu0 0.0
    %222 = vmatpush1.msra.mxu0 %v192
    %223 = vmatprep.subr.mxu0 0.0
    %224 = vmatpush1.msra.mxu0 %v193
    %225 = vmatprep.subr.mxu0 0.0
    %226 = vmatpush1.msra.mxu0 %v194
    %227 = vmatprep.subr.mxu0 0.0
    %228 = vmatpush1.msra.mxu0 0.0
    %229 = vmatprep.subr.mxu0 0.0
    %230 = vmatpush1.msra.mxu0 0.0
    %231 = vmatprep.subr.mxu0 0.0
    %232 = vmatpush1.msra.mxu0 0.0
    %233 = vmatprep.subr.mxu0 0.0
    %234 = vmatpush1.msra.mxu0 0.0
    %235 = vmatprep.subr.mxu0 0.0
    %236 = vmatpush1.msra.mxu0 0.0
    %237 = vmatprep.subr.mxu0 0.0
    %238 = vmatpush1.msra.mxu0 0.0
    %239 = vmatprep.subr.mxu0 0.0
    %240 = vmatpush1.msra.mxu0 0.0
    %241 = vmatprep.subr.mxu0 0.0
    %242 = vmatpush1.msra.mxu0 0.0
    %243 = vmatprep.subr.mxu0 0.0
    %244 = vmatpush1.msra.mxu0 0.0
    %245 = vmatprep.subr.mxu0 0.0
    %246 = vmatpush1.msra.mxu0 0.0
    %247 = vmatprep.subr.mxu0 0.0
    %248 = vmatpush1.msra.mxu0 0.0
    %249 = vmatprep.subr.mxu0 0.0
    %250 = vmatpush1.msra.mxu0 0.0
    %251 = vmatprep.subr.mxu0 0.0
    %252 = vmatpush1.msra.mxu0 0.0
    %253 = vmatprep.subr.mxu0 0.0
    %254 = vmatpush1.msra.mxu0 0.0
    %255 = vmatprep.subr.mxu0 0.0
    %256 = vmatpush1.msra.mxu0 0.0
    %257 = vmatprep.subr.mxu0 0.0
    %258 = vmatpush1.msra.mxu0 0.0
    %259 = vmatprep.mubr.f32.mxu0 0.0
    %260 = vmatmul.mubr.f32.gmra.mrb[0].mxu0 %v178
    %v261 = vpop.f32.mrb[0].mxu0
    %v262 = vadd.f32 %v139, %v261
    %v263 = vpop.f32.mrb[0].mxu0
    %264 = vdwg.mxu0
    %v265 = vlaneseq
    %v266 = vshrl.u32 %v265, 7
    %v267 = vsub.s32 0, %v266
    %v268 = vrot.slane %v161, %v267
    %v269 = vadd.f32 %v262, %v268
    %270 = vadd.xlane.f32.xlu0 %v269
    %v271 = vpop.xlane.xlu0 %270
    %v272 = vrcp.pop 128.0
    %v273 = vmul.f32 %v271, %v272
    %v274 = vsub.f32 %v269, %v273
    %v275 = vmul.f32 %v274, %v274
    %276 = vadd.xlane.f32.xlu0 %v275
    %v277 = vpop.xlane.xlu0 %276
    %v278 = vmul.f32 %v277, %v272
    %v279 = vadd.f32 %v278, 1e-05
    %v280 = vrsqrt.pop %v279
    %v281 = vmul.f32 %v274, %v280
    %v282 = vlaneseq
    %v283 = vshrl.u32 %v282, 7
    %v284 = vsub.s32 0, %v283
    %v285 = vrot.slane %v164, %v284
    %v286 = vmul.f32 %v281, %v285
    %v287 = vlaneseq
    %v288 = vshrl.u32 %v287, 7
    %v289 = vsub.s32 0, %v288
    %v290 = vrot.slane %v165, %v289
    %v291 = vadd.f32 %v286, %v290
    %292 = vst [vmem:[#allocation8] sm:$0xff] %v291
    // Predicated region
    $region30: #{tpu_custom_call.1} parent=1 // pred_check
      _
    $region31: #{tpu_custom_call.1} parent=1 // pred_check_branch
      %294 = sbr.rel (0) target = $region33
    $region32: #{tpu_custom_call.1} parent=1 // pred_region
      %s296 = ssub.s32 128, 128
      %297 = vsyncadd [#allocation4], %s296
      %s299 = sshll.u32 [#allocation8], 4
      %s300 = int_to_ptr.vmem [resolvable:$true] %s299
      %302 = dma.vmem_to_hbm [thread:$0]  %s300, 128, %s4, [#allocation4]
    $region33: #{tpu_custom_call.1} parent=1 // pred_fallthru
      _
    // Predicated region
    $region34: #{tpu_custom_call.1} parent=1 // pred_check
      _
    $region35: #{tpu_custom_call.1} parent=1 // pred_check_branch
      %304 = sbr.rel (0) target = $region37
    $region36: #{tpu_custom_call.1} parent=1 // pred_region
      %305 = dma.done [#allocation4], 128
    $region37: #{tpu_custom_call.1} parent=1 // pred_fallthru
      _
    %306 = vsyncpa [#allocation3], 1
    %307 = vsyncpa [#allocation6], 1
    %308 = vsyncpa [#allocation4], 1

</llo_original>
